<compile_context>
chip_gen: v7x
topology: tpu7x:2x2x1
jax: 0.10.0
libtpu: 0.0.40
codegen_flags: <defaults>
</compile_context>

<pallas_src>
import jax
import jax.numpy as jnp
from jax.experimental import pallas as pl
from jax.experimental.pallas import tpu as pltpu


def _round_up(n, m):
    return ((n + m - 1) // m) * m


def _sample_head_kernel(x_ref, w_ref, b_ref, o_ref):
    # x_ref: (TM, H)  activation tile in VMEM
    # w_ref: (1, H)   Linear weight row (out_size == 1), grid-invariant
    # b_ref: (1, 1)   bias scalar in SMEM
    # o_ref: (1, TM)  lane-dense logits for this tile (f32)
    b = b_ref[0, 0]
    # Single MXU contraction over H (contract last axis of both operands);
    # yields a lane-dense (1, TM) row directly, accumulated in f32.
    y = jax.lax.dot_general(
        w_ref[...], x_ref[...],
        dimension_numbers=(((1,), (1,)), ((), ())),
        preferred_element_type=jnp.float32,
    )
    o_ref[...] = (y + b).astype(o_ref.dtype)


def sample_head_forward(x, weight, bias):
    """x: (B, S, H); weight: (1, H); bias: (1,). Returns (B, S) f32 logits."""
    B, S, H = x.shape
    M = B * S

    x2 = x.reshape(M, H)                       # no padding pass over x
    w2 = weight.astype(x2.dtype)               # MXU wants matching operand dtypes
    b2 = bias.astype(jnp.float32).reshape(1, 1)

    itemsize = jnp.dtype(x2.dtype).itemsize
    h_pad = _round_up(H, 128)                  # lane padding of a (TM, H) tile in VMEM

    # Per-generation VMEM budget for the double-buffered x tiles.
    try:
        vmem_cap = int(pltpu.get_tpu_info().vmem_capacity_bytes)
    except Exception:
        vmem_cap = 64 * 1024 * 1024            # conservative (v7x) fallback
    x_budget = min(vmem_cap // 4, 32 * 1024 * 1024)

    # Largest TM (multiple of 128) whose double-buffered x tiles fit the budget.
    per_row_vmem = 2 * itemsize * h_pad
    TM = max(128, (x_budget // per_row_vmem) // 128 * 128)
    TM = min(TM, 8192)

    # Keep >= ~4 grid steps when each tile would still carry >= ~1 MiB of real
    # HBM traffic (amortizes ~0.35us/step; lets v7x megacore shard the M axis).
    min_tm_1mb = max(128, _round_up(pl.cdiv(1 << 20, itemsize * h_pad), 128))
    quarter = _round_up(pl.cdiv(M, 4), 128)
    if quarter >= min_tm_1mb:
        TM = min(TM, quarter)

    TM = min(TM, _round_up(M, 128))            # never exceed the data
    G = pl.cdiv(M, TM)                         # partial trailing block is masked

    # VMEM limit from the actual footprint (double-buffered x + out + weight),
    # plus headroom; stays well under v7x's 64 MiB physical VMEM.
    x_vmem = 2 * TM * h_pad * itemsize
    out_vmem = 2 * 8 * TM * 4                  # (1, TM) f32 padded to 8 sublanes
    w_vmem = 2 * 8 * h_pad * itemsize
    vmem_limit = max(int(x_vmem + out_vmem + w_vmem) + (4 << 20), 16 << 20)
    vmem_limit = min(vmem_limit, 48 << 20)

    out = pl.pallas_call(
        _sample_head_kernel,
        out_shape=jax.ShapeDtypeStruct((1, M), jnp.float32),
        grid_spec=pltpu.PrefetchScalarGridSpec(
            num_scalar_prefetch=0,
            grid=(G,),
            in_specs=[
                pl.BlockSpec((TM, H), lambda i: (i, 0)),   # streamed x tiles
                pl.BlockSpec((1, H), lambda i: (0, 0)),    # weight, grid-invariant
                pl.BlockSpec(memory_space=pltpu.SMEM),     # bias scalar
            ],
            # Lane-dense output; partial trailing block is clipped on store.
            out_specs=pl.BlockSpec((1, TM), lambda i: (0, i)),
        ),
        compiler_params=pltpu.CompilerParams(
            dimension_semantics=("parallel",),  # independent M tiles (megacore on v7x)
            vmem_limit_bytes=vmem_limit,
        ),
    )(x2, w2, b2)

    # (1, M) -> (B, S); == linear(x).squeeze(-1)
    return out.reshape(B, S)


if __name__ == "__main__":
    B, S, H = 2, 8, 32  # batch, seq, input_size ; out_size == 1

    key = jax.random.PRNGKey(0)
    kx, kw, kb = jax.random.split(key, 3)

    x = jax.random.normal(kx, (B, S, H), dtype=jnp.float32)

    # Deterministic nn.Linear-style init: U(-1/sqrt(H), 1/sqrt(H))
    bound = 1.0 / jnp.sqrt(jnp.float32(H))
    weight = jax.random.uniform(kw, (1, H), jnp.float32, -bound, bound)
    bias = jax.random.uniform(kb, (1,), jnp.float32, -bound, bound)

    logits = sample_head_forward(x, weight, bias)
    jax.block_until_ready(logits)

    # Cross-check against plain JAX reference (linear + squeeze).
    ref = (x @ weight.reshape(H, 1) + bias).squeeze(-1)
    assert logits.shape == (B, S)
    assert jnp.allclose(logits, ref, atol=1e-5, rtol=1e-5)

    print("KERNEL_OK")
</pallas_src>

<mosaic_0001>
module attributes {stable_mosaic.version = 11 : i64} {
  func.func @_sample_head_kernel(%arg0: i32, %arg1: memref<128x32xf32, #tpu.memory_space<vmem>>, %arg2: memref<1x32xf32, #tpu.memory_space<vmem>>, %arg3: memref<1x1xf32, #tpu.memory_space<smem>>, %arg4: memref<1x128xf32, #tpu.memory_space<vmem>>) attributes {dimension_semantics = [#tpu.dimension_semantics<parallel>], iteration_bounds = array<i64: 1>, scalar_prefetch = 0 : i64, scratch_operands = 0 : i64, tpu.core_type = #tpu.core_type<tc>, window_params = [{transform_indices = @transform_0, window_bounds = array<i64: 128, 32>}, {pipeline_mode = #tpu.pipeline_mode<synchronous>, transform_indices = @transform_1, window_bounds = array<i64: 1, 32>}, {transform_indices = @transform_2, window_bounds = array<i64: 1, 1>}, {transform_indices = @transform_3, window_bounds = array<i64: 1, 128>}]} {
    %c0 = arith.constant 0 : index
    %c0_0 = arith.constant 0 : index
    %0 = memref.load %arg3[%c0, %c0_0] : memref<1x1xf32, #tpu.memory_space<smem>>
    %c0_1 = arith.constant 0 : index
    %c0_2 = arith.constant 0 : index
    %1 = vector.load %arg2[%c0_1, %c0_2] : memref<1x32xf32, #tpu.memory_space<vmem>>, vector<1x32xf32>
    %c0_3 = arith.constant 0 : index
    %c0_4 = arith.constant 0 : index
    %2 = vector.load %arg1[%c0_3, %c0_4] : memref<128x32xf32, #tpu.memory_space<vmem>>, vector<128x32xf32>
    %cst = arith.constant dense<0.000000e+00> : vector<1x128xf32>
    %3 = tpu.matmul %1, %2, %cst {dimension_numbers = #tpu.dot_dimension_numbers<[1], [1], [0], [0], [0, 0, 1, 0], [], []>} : vector<1x32xf32>, vector<128x32xf32>, vector<1x128xf32> -> vector<1x128xf32>
    %4 = vector.broadcast %0 : f32 to vector<1x128xf32>
    %5 = arith.addf %3, %4 : vector<1x128xf32>
    %c0_5 = arith.constant 0 : index
    %c0_6 = arith.constant 0 : index
    %6 = vector.load %arg4[%c0_5, %c0_6] : memref<1x128xf32, #tpu.memory_space<vmem>>, vector<1x128xf32>
    tpu.vector_store %arg4[%c0_5, %c0_6], %5 {strides = array<i32>} : memref<1x128xf32, #tpu.memory_space<vmem>>, vector<1x128xf32>,
    return
  }
  func.func @transform_0(%arg0: i32) -> (i32, i32) {
    %c0_i32 = arith.constant 0 : i32
    %c0_i32_0 = arith.constant 0 : i32
    return %arg0, %c0_i32 : i32, i32
  }
  func.func @transform_1(%arg0: i32) -> (i32, i32) {
    %c0_i32 = arith.constant 0 : i32
    %c0_i32_0 = arith.constant 0 : i32
    %c0_i32_1 = arith.constant 0 : i32
    return %c0_i32, %c0_i32_0 : i32, i32
  }
  func.func @transform_2(%arg0: i32) -> (i32, i32) {
    %c0_i32 = arith.constant 0 : i32
    %c0_i32_0 = arith.constant 0 : i32
    %c0_i32_1 = arith.constant 0 : i32
    return %c0_i32, %c0_i32_0 : i32, i32
  }
  func.func @transform_3(%arg0: i32) -> (i32, i32) {
    %c0_i32 = arith.constant 0 : i32
    %c0_i32_0 = arith.constant 0 : i32
    return %c0_i32, %arg0 : i32, i32
  }
}

</mosaic_0001>

<llo_original>
// kernel: tpu_custom_call.1
$region0: #{tpu_custom_call.1}
  #allocation0 [shape = 'u32[]', space=smem, size = 0x4, offset = 0x4, fixed_abs, tag = 'smem constant byte address 0x4 - core index']
  #allocation1 [shape = 'u32[144,128]{1,0:T(1,128)}', space=vmem, size = 0x12000, scoped, tag = 'internal scratch']
  #allocation2 [shape = 'f32[1,1]{1,0:T(1,128)S(6)}', space=smem, size = 0x200, scoped, tag = 'scoped memory for tpu_custom_call.1']
  %s0 = inlined_call_operand.hbm [shape: f32[16,32], index: 0, kind: input, shape index: {}]
  %s1 = inlined_call_operand.vmem [shape: f32[1,32], index: 1, kind: input, shape index: {}]
  %s2 = inlined_call_operand.<no memory space> [shape: f32[1,1], index: 2, kind: input, shape index: {}]
  %s3 = inlined_call_operand.hbm [shape: f32[1,16], index: 3, kind: output, shape index: {}]
  %s4 = sld [smem:[#allocation0]]
  $region26: #{tpu_custom_call.1} parent=0
    _
  %s6 = ssub.s32 1, %s4
  %s7 = scalar_select 0, %s6, %s4
  %8 = sst [smem:[#allocation2]] %s2
  $region1: #{tpu_custom_call.1} parent=0
    #allocation3 [shape = 'u8[65536]{0}', space=vmem, size = 0x10000, scoped, tag = 'input window, operand 0, single buffered']
    #allocation4 [shape = 's32[1]{0}', space=sflag, size = 0x4, scoped, tag = 'scoped memory for tpu_custom_call.1']
    #allocation5 [shape = 's32[1]{0}', space=sflag, size = 0x4, scoped, tag = 'scoped memory for tpu_custom_call.1']
    #allocation6 [shape = 'u8[512]{0}', space=vmem, size = 0x400, scoped, tag = 'output window, operand 0, single buffered']
    %9 = vsyncpa [#allocation4], 0
    %10 = vsyncpa [#allocation5], 0
    // Predicated region
    $region2: #{tpu_custom_call.1} parent=1 // pred_check
      _
    $region3: #{tpu_custom_call.1} parent=1 // pred_check_branch
      %12 = sbr.rel (0) target = $region5
    $region4: #{tpu_custom_call.1} parent=1 // pred_region
      %s14 = ssub.s32 2048, 256
      %15 = vsyncadd [#allocation4], %s14
      %s16 = sshll.u32 [#allocation3], 4
      %s17 = int_to_ptr.vmem [resolvable:$true] %s16
      %22 = dma.hbm_to_vmem [thread:$0]  %s0, 256, %s17, [#allocation4], 128, 128, 8
    $region5: #{tpu_custom_call.1} parent=1 // pred_fallthru
      _
    // Predicated region
    $region6: #{tpu_custom_call.1} parent=1 // pred_check
      _
    $region7: #{tpu_custom_call.1} parent=1 // pred_check_branch
      %24 = sbr.rel (0) target = $region9
    $region8: #{tpu_custom_call.1} parent=1 // pred_region
      _
    $region9: #{tpu_custom_call.1} parent=1 // pred_fallthru
      _
    // Predicated region
    $region10: #{tpu_custom_call.1} parent=1 // pred_check
      _
    $region11: #{tpu_custom_call.1} parent=1 // pred_check_branch
      %26 = sbr.rel (0) target = $region13
    $region12: #{tpu_custom_call.1} parent=1 // pred_region
      _
    $region13: #{tpu_custom_call.1} parent=1 // pred_fallthru
      _
    // Predicated region
    $region14: #{tpu_custom_call.1} parent=1 // pred_check
      _
    $region15: #{tpu_custom_call.1} parent=1 // pred_check_branch
      %28 = sbr.rel (0) target = $region17
    $region16: #{tpu_custom_call.1} parent=1 // pred_region
      %29 = dma.done [#allocation4], 2048
    $region17: #{tpu_custom_call.1} parent=1 // pred_fallthru
      _
    %s30 = sld [smem:[#allocation2]]
    %v31 = vld [vmem:[%s1] sm:$0x1]
    %v32 = vld [vmem:[#allocation3] sm:$0xff]
    %v33 = vld [vmem:[#allocation3 + $0x8] sm:$0xff]
    %v34 = vld [vmem:[#allocation3 + $0x10] sm:$0xff]
    %v35 = vld [vmem:[#allocation3 + $0x18] sm:$0xff]
    %v36 = vld [vmem:[#allocation3 + $0x20] sm:$0xff]
    %v37 = vld [vmem:[#allocation3 + $0x28] sm:$0xff]
    %v38 = vld [vmem:[#allocation3 + $0x30] sm:$0xff]
    %v39 = vld [vmem:[#allocation3 + $0x38] sm:$0xff]
    %v40 = vld [vmem:[#allocation3 + $0x40] sm:$0xff]
    %v41 = vld [vmem:[#allocation3 + $0x48] sm:$0xff]
    %v42 = vld [vmem:[#allocation3 + $0x50] sm:$0xff]
    %v43 = vld [vmem:[#allocation3 + $0x58] sm:$0xff]
    %v44 = vld [vmem:[#allocation3 + $0x60] sm:$0xff]
    %v45 = vld [vmem:[#allocation3 + $0x68] sm:$0xff]
    %v46 = vld [vmem:[#allocation3 + $0x70] sm:$0xff]
    %v47 = vld [vmem:[#allocation3 + $0x78] sm:$0xff]
    %v48 = vstv %s30
    %vm49 = vcmask 261120
    %v51 = vsel %vm49, %v31, 0
    %v54 = vsel %vm49, %v32, 0
    %v57 = vsel %vm49, %v33, 0
    %v60 = vsel %vm49, %v34, 0
    %v63 = vsel %vm49, %v35, 0
    %v66 = vsel %vm49, %v36, 0
    %v69 = vsel %vm49, %v37, 0
    %v72 = vsel %vm49, %v38, 0
    %v75 = vsel %vm49, %v39, 0
    %v78 = vsel %vm49, %v40, 0
    %v81 = vsel %vm49, %v41, 0
    %v84 = vsel %vm49, %v42, 0
    %v87 = vsel %vm49, %v43, 0
    %v90 = vsel %vm49, %v44, 0
    %v93 = vsel %vm49, %v45, 0
    %v96 = vsel %vm49, %v46, 0
    %v99 = vsel %vm49, %v47, 0
    %101 = vmatprep.subr.mxu0 0.0
    %102 = vmatpush1.xpose.msra.mxu0 %v54
    %103 = vmatprep.subr.mxu0 0.0
    %104 = vmatpush1.xpose.msra.mxu0 %v57
    %105 = vmatprep.subr.mxu0 0.0
    %106 = vmatpush1.xpose.msra.mxu0 %v60
    %107 = vmatprep.subr.mxu0 0.0
    %108 = vmatpush1.xpose.msra.mxu0 %v63
    %109 = vmatprep.subr.mxu0 0.0
    %110 = vmatpush1.xpose.msra.mxu0 %v66
    %111 = vmatprep.subr.mxu0 0.0
    %112 = vmatpush1.xpose.msra.mxu0 %v69
    %113 = vmatprep.subr.mxu0 0.0
    %114 = vmatpush1.xpose.msra.mxu0 %v72
    %115 = vmatprep.subr.mxu0 0.0
    %116 = vmatpush1.xpose.msra.mxu0 %v75
    %117 = vmatprep.subr.mxu0 0.0
    %118 = vmatpush1.xpose.msra.mxu0 %v78
    %119 = vmatprep.subr.mxu0 0.0
    %120 = vmatpush1.xpose.msra.mxu0 %v81
    %121 = vmatprep.subr.mxu0 0.0
    %122 = vmatpush1.xpose.msra.mxu0 %v84
    %123 = vmatprep.subr.mxu0 0.0
    %124 = vmatpush1.xpose.msra.mxu0 %v87
    %125 = vmatprep.subr.mxu0 0.0
    %126 = vmatpush1.xpose.msra.mxu0 %v90
    %127 = vmatprep.subr.mxu0 0.0
    %128 = vmatpush1.xpose.msra.mxu0 %v93
    %129 = vmatprep.subr.mxu0 0.0
    %130 = vmatpush1.xpose.msra.mxu0 %v96
    %131 = vmatprep.subr.mxu0 0.0
    %132 = vmatpush1.xpose.msra.mxu0 %v99
    %133 = vmatprep.subr.mxu0 0.0
    %134 = vmatpush1.xpose.msra.mxu0 0.0
    %135 = vmatprep.subr.mxu0 0.0
    %136 = vmatpush1.xpose.msra.mxu0 0.0
    %137 = vmatprep.subr.mxu0 0.0
    %138 = vmatpush1.xpose.msra.mxu0 0.0
    %139 = vmatprep.subr.mxu0 0.0
    %140 = vmatpush1.xpose.msra.mxu0 0.0
    %141 = vmatprep.subr.mxu0 0.0
    %142 = vmatpush1.xpose.msra.mxu0 0.0
    %143 = vmatprep.subr.mxu0 0.0
    %144 = vmatpush1.xpose.msra.mxu0 0.0
    %145 = vmatprep.subr.mxu0 0.0
    %146 = vmatpush1.xpose.msra.mxu0 0.0
    %147 = vmatprep.subr.mxu0 0.0
    %148 = vmatpush1.xpose.msra.mxu0 0.0
    %149 = vmatprep.subr.mxu0 0.0
    %150 = vmatpush1.xpose.msra.mxu0 0.0
    %151 = vmatprep.subr.mxu0 0.0
    %152 = vmatpush1.xpose.msra.mxu0 0.0
    %153 = vmatprep.subr.mxu0 0.0
    %154 = vmatpush1.xpose.msra.mxu0 0.0
    %155 = vmatprep.subr.mxu0 0.0
    %156 = vmatpush1.xpose.msra.mxu0 0.0
    %157 = vmatprep.subr.mxu0 0.0
    %158 = vmatpush1.xpose.msra.mxu0 0.0
    %159 = vmatprep.subr.mxu0 0.0
    %160 = vmatpush1.xpose.msra.mxu0 0.0
    %161 = vmatprep.subr.mxu0 0.0
    %162 = vmatpush1.xpose.msra.mxu0 0.0
    %163 = vmatprep.subr.mxu0 0.0
    %164 = vmatpush1.xpose.msra.mxu0 0.0
    %165 = vmatprep.mubr.f32.mxu0 0.0
    %166 = vmatmul.mubr.f32.gmra.mrb[0].mxu0 %v51
    %v167 = vpop.f32.mrb[0].mxu0
    %v168 = vadd.f32 %v48, %v167
    %v169 = vpop.f32.mrb[0].mxu0
    %170 = vdwg.mxu0
    %171 = vst [vmem:[#allocation6] sm:$0x1] %v168
    // Predicated region
    $region18: #{tpu_custom_call.1} parent=1 // pred_check
      _
    $region19: #{tpu_custom_call.1} parent=1 // pred_check_branch
      %173 = sbr.rel (0) target = $region21
    $region20: #{tpu_custom_call.1} parent=1 // pred_region
      %s175 = ssub.s32 16, 16
      %176 = vsyncadd [#allocation5], %s175
      %s178 = sshll.u32 [#allocation6], 4
      %s179 = int_to_ptr.vmem [resolvable:$true] %s178
      %181 = dma.vmem_to_hbm [thread:$0]  %s179, 16, %s3, [#allocation5]
    $region21: #{tpu_custom_call.1} parent=1 // pred_fallthru
      _
    // Predicated region
    $region22: #{tpu_custom_call.1} parent=1 // pred_check
      _
    $region23: #{tpu_custom_call.1} parent=1 // pred_check_branch
      %183 = sbr.rel (0) target = $region25
    $region24: #{tpu_custom_call.1} parent=1 // pred_region
      %184 = dma.done [#allocation5], 16
    $region25: #{tpu_custom_call.1} parent=1 // pred_fallthru
      _
    %185 = vsyncpa [#allocation4], 1
    %186 = vsyncpa [#allocation5], 1

</llo_original>
